<compile_context>
chip_gen: v7x
topology: tpu7x:2x2x1
jax: 0.10.0
libtpu: 0.0.40
codegen_flags: <defaults>
</compile_context>

<pallas_src>
import jax
import jax.numpy as jnp
from jax.experimental import pallas as pl
from jax.experimental.pallas import tpu as pltpu


# ----------------------------------------------------------------------------
# Pallas kernel: conv1x1 + ReLU + (conv1x1 fused with bev_seg conv1x1)
# (the z max-pool has been hoisted into the XLA prologue)
# ----------------------------------------------------------------------------
def _bev_head_kernel(x_ref, w1_ref, b1_ref, w2s_ref, b2s_ref, out_ref):
    """x_ref   : (tile, zp*C)   bf16, pooled features, index = z'*C + c
       w1_ref  : (zp*C, C)      bf16
       b1_ref  : (1, C)         f32
       w2s_ref : (C, C+ncls)    bf16  = [w2 | w2 @ ws]
       b2s_ref : (1, C+ncls)    f32   = [b2 | b2 @ ws + bs]
       out_ref : (tile, C+ncls) bf16  = [bev_f | bev_seg_logits]
    """
    # mlp_xy[0]: Conv2d(1x1)(zp*C -> C) + ReLU   (bf16 operands, f32 accumulate)
    h = jnp.dot(x_ref[...], w1_ref[...], preferred_element_type=jnp.float32)
    h = jnp.maximum(h + b1_ref[...], 0.0).astype(jnp.bfloat16)

    # mlp_xy[2] fused with bev_seg: one matmul producing [bev_f | seg]
    out = jnp.dot(h, w2s_ref[...], preferred_element_type=jnp.float32)
    out_ref[...] = (out + b2s_ref[...]).astype(out_ref.dtype)


def _pick_tile(n):
    # Multi-MiB blocks amortize the ~0.35us/step pipeline overhead; >= 8 grid
    # steps keeps both v7x TensorCores busy and overlaps prologue/epilogue DMA.
    # N is padded up to a tile multiple by the caller, so divisibility is not
    # a constraint here.
    for t in (8192, 4096, 2048, 1024):
        if pl.cdiv(n, t) >= 8:
            return t
    for t in (1024, 512, 256, 128):
        if pl.cdiv(n, t) >= 2:
            return t
    # Tiny problems: a single grid step, rounded to the bf16 sublane granule.
    return max(16, ((n + 15) // 16) * 16)


def bev_pool_mlp_seg(volume, w1, b1, w2, b2, ws, bs, *, split_z=8, pool_kz=2,
                     tile=None):
    """volume: [B, C, X, Y, Z] (PyTorch NCDHW).

    1x1-conv weights are stored as (Cin, Cout) (transposed PyTorch layout).
    Returns bev_f [B, C, X, Y] and bev_seg_logits [B, num_cls, X, Y] (f32).
    """
    B, C, X, Y, Z = volume.shape
    kz = pool_kz                       # grid_size[2] // split[2]
    zp = Z // kz
    assert zp == split_z, "pooled z must equal split[2] for the 1x1 conv"
    zp_c = zp * C
    assert zp_c % 128 == 0, "pooled feature width must be lane-aligned"
    N = B * X * Y
    ncls = ws.shape[1]

    if tile is None:
        tile = _pick_tile(N)
    assert tile % 16 == 0
    n_steps = pl.cdiv(N, tile)
    n_pad = n_steps * tile

    # MaxPool3d(kernel=[1,1,kz], stride=[1,1,kz]) over z, done in the XLA
    # prologue on the native layout (lane-local reduce over the contiguous z
    # window).  The channels-last transpose + bf16 downcast ride the next copy
    # and now move only the pooled data.
    # TODO(synk): if the upstream producer emits the volume channels-last
    # ([B, X, Y, Z, C]) this transpose pass disappears entirely.
    pooled = volume.reshape(B, C, X, Y, zp, kz).max(axis=-1)      # [B,C,X,Y,zp]
    v = jnp.transpose(pooled, (0, 2, 3, 4, 1)).reshape(N, zp_c)   # idx = z'*C+c
    v = v.astype(jnp.bfloat16)
    if n_pad != N:
        v = jnp.pad(v, ((0, n_pad - N), (0, 0)))                  # masked tail

    w1b = w1.astype(jnp.bfloat16)                                  # (zp*C, C)
    b1r = b1.reshape(1, -1).astype(jnp.float32)
    # Fuse mlp_xy[2] and bev_seg into one matmul: [w2 | w2@ws], [b2 | b2@ws+bs]
    # (valid because there is no nonlinearity/BN between them in the module).
    w2s = jnp.concatenate([w2, w2 @ ws], axis=1).astype(jnp.bfloat16)
    b2s = jnp.concatenate([b2, b2 @ ws + bs]).reshape(1, -1).astype(jnp.float32)

    flops = 2 * n_pad * (zp_c * C + C * (C + ncls))
    bytes_accessed = (n_pad * (zp_c + (C + ncls)) * 2              # in + out bf16
                      + (zp_c * C + C * (C + ncls)) * 2            # bf16 weights
                      + (2 * C + ncls) * 4)                        # f32 biases

    out = pl.pallas_call(
        _bev_head_kernel,
        out_shape=jax.ShapeDtypeStruct((n_pad, C + ncls), jnp.bfloat16),
        grid_spec=pltpu.PrefetchScalarGridSpec(
            num_scalar_prefetch=0,
            grid=(n_steps,),
            in_specs=[
                pl.BlockSpec((tile, zp_c), lambda i: (i, 0)),
                pl.BlockSpec((zp_c, C), lambda i: (0, 0)),
                pl.BlockSpec((1, C), lambda i: (0, 0)),
                pl.BlockSpec((C, C + ncls), lambda i: (0, 0)),
                pl.BlockSpec((1, C + ncls), lambda i: (0, 0)),
            ],
            out_specs=pl.BlockSpec((tile, C + ncls), lambda i: (i, 0)),
        ),
        compiler_params=pltpu.CompilerParams(
            dimension_semantics=("parallel",),
            vmem_limit_bytes=40 * 1024 * 1024),
        cost_estimate=pl.CostEstimate(flops=flops, transcendentals=0,
                                      bytes_accessed=bytes_accessed),
    )(v, w1b, b1r, w2s, b2s)

    out = out[:N]
    # TODO(synk): downstream consumers that accept channels-last bf16 can take
    # out[:, :C].reshape(B, X, Y, C) directly and skip these transpose passes.
    bev_f = out[:, :C].reshape(B, X, Y, C).transpose(0, 3, 1, 2).astype(jnp.float32)
    seg = out[:, C:].reshape(B, X, Y, ncls).transpose(0, 3, 1, 2).astype(jnp.float32)
    return bev_f, seg


# ----------------------------------------------------------------------------
# JAX glue reproducing the geometric parts of BEVFeature.forward
# ----------------------------------------------------------------------------
def generate_grid(image_shape):
    h, w = image_shape
    ys, xs = jnp.meshgrid(jnp.arange(h, dtype=jnp.float32),
                          jnp.arange(w, dtype=jnp.float32), indexing="ij")
    return jnp.stack([ys, xs], axis=0)                    # [2, H, W]


def pix2vox_approx(image_grid, depth, K, E, voxel_origin, voxel_size,
                   post_rot, post_tran):
    # TODO(synk): exact pix2vox from the source repo is not provided; standard
    # pinhole back-projection (undo post aug -> K^-1 -> E^-1 -> voxel index).
    B = depth.shape[0]
    _, _, H, W = depth.shape
    uv = jnp.broadcast_to(image_grid, (B, 2, H, W)).astype(jnp.float32)
    pts = uv - post_tran[:, :2, None, None]
    pr_inv = jnp.linalg.inv(post_rot)[:, :2, :2]
    pts = jnp.einsum("bij,bjhw->bihw", pr_inv, pts)
    ones = jnp.ones((B, 1, H, W), jnp.float32)
    pix_h = jnp.concatenate([pts, ones], axis=1) * depth
    cam = jnp.einsum("bij,bjhw->bihw", jnp.linalg.inv(K), pix_h)
    cam_h = jnp.concatenate([cam, ones], axis=1)
    world = jnp.einsum("bij,bjhw->bihw", jnp.linalg.inv(E), cam_h)[:, :3]
    vox = (world - voxel_origin[:, :, None, None]) / voxel_size
    vox = jnp.floor(vox).astype(jnp.int32)
    return vox.transpose(0, 2, 3, 1).reshape(B, H * W, 1, 3)


def bev_feature_forward(params, volume, feats, depth, K, E, voxel_origin,
                        post_rot, post_tran, projected_pix, *,
                        image_shape, scene_shape, voxel_size):
    B = feats[0].shape[0]
    del scene_shape

    image_grid = jnp.flip(generate_grid(image_shape), axis=0)[None]  # [1,2,H,W]
    vol_pts = pix2vox_approx(image_grid, depth[:, None], K, E, voxel_origin,
                             voxel_size, post_rot, post_tran)

    img_hw = jnp.asarray(image_shape, dtype=projected_pix.dtype)
    ref_pix = jnp.flip((jnp.flip(projected_pix, axis=-1) + 0.5) / img_hw, axis=-1)

    # TODO(synk): VoxelProposalLayer's DeformableTransformerLayer and
    # LearnableSqueezePositionalEncoding are not defined in the reference; the
    # deformable cross-attention refinement (data-dependent voxel gather /
    # scatter) is skipped, so the volume passes through unchanged here.
    _ = (vol_pts, ref_pix, B)
    volume_out = volume

    bev_f, bev_seg_logits = bev_pool_mlp_seg(
        volume_out, params["w1"], params["b1"], params["w2"], params["b2"],
        params["ws"], params["bs"],
        split_z=8, pool_kz=volume_out.shape[-1] // 8)
    return volume_out, bev_f, bev_seg_logits


# ----------------------------------------------------------------------------
if __name__ == "__main__":
    key = jax.random.PRNGKey(0)
    B, C, X, Y, Z = 2, 32, 16, 16, 16        # in_channels = embed_dims = 32
    num_cls = 8
    H, W = 8, 8
    image_shape = (H, W)
    scene_shape = (X, Y, Z)
    voxel_size = 0.2
    zp, kz = 8, Z // 8                        # split[2]=8 -> pool kernel kz=2

    ks = jax.random.split(key, 12)
    volume = jax.random.normal(ks[0], (B, C, X, Y, Z), jnp.float32)
    feats = [jax.random.normal(ks[1], (B, C, H, W), jnp.float32)]
    depth = jax.random.uniform(ks[2], (B, H, W), jnp.float32, 1.0, 10.0)
    K = jnp.broadcast_to(
        jnp.array([[50.0, 0.0, W / 2.0], [0.0, 50.0, H / 2.0], [0.0, 0.0, 1.0]],
                  jnp.float32), (B, 3, 3))
    E = jnp.broadcast_to(jnp.eye(4, dtype=jnp.float32), (B, 4, 4))
    voxel_origin = jnp.zeros((B, 3), jnp.float32)
    post_rot = jnp.broadcast_to(jnp.eye(3, dtype=jnp.float32), (B, 3, 3))
    post_tran = jnp.zeros((B, 3), jnp.float32)
    projected_pix = jax.random.uniform(ks[3], (B, X * Y * Z, 2), jnp.float32,
                                       0.0, float(W))

    # Deterministic synthetic parameters (Conv2d 1x1 weights stored as (Cin, Cout)).
    w1 = jax.random.normal(ks[4], (zp * C, C), jnp.float32) * 0.02   # mlp_xy[0]
    b1 = jax.random.normal(ks[5], (C,), jnp.float32) * 0.02
    w2 = jax.random.normal(ks[6], (C, C), jnp.float32) * 0.02        # mlp_xy[2]
    b2 = jax.random.normal(ks[7], (C,), jnp.float32) * 0.02
    ws = jax.random.normal(ks[8], (C, num_cls), jnp.float32) * 0.02  # bev_seg
    bs = jax.random.normal(ks[9], (num_cls,), jnp.float32) * 0.02
    params = dict(w1=w1, b1=b1, w2=w2, b2=b2, ws=ws, bs=bs)

    vol_out, bev_f, seg = bev_feature_forward(
        params, volume, feats, depth, K, E, voxel_origin, post_rot, post_tran,
        projected_pix, image_shape=image_shape, scene_shape=scene_shape,
        voxel_size=voxel_size)
    jax.block_until_ready(vol_out)
    jax.block_until_ready(bev_f)
    jax.block_until_ready(seg)

    assert vol_out.shape == (B, C, X, Y, Z)
    assert bev_f.shape == (B, C, X, Y)
    assert seg.shape == (B, num_cls, X, Y)

    # Pure-JAX reference for the fused BEV head.  Pooling is f32 (as in the
    # kernel prologue); the pooled features / w1 are bf16-rounded to match the
    # kernel's input quantization.
    pooled_ref = volume.reshape(B, C, X, Y, zp, kz).max(axis=-1)     # [B,C,X,Y,zp]
    pooled_bf = pooled_ref.astype(jnp.bfloat16).astype(jnp.float32)
    w1_bf = w1.astype(jnp.bfloat16).astype(jnp.float32)
    feat = pooled_bf.transpose(0, 4, 1, 2, 3).reshape(B, zp * C, X, Y)  # z'-major
    h = jnp.maximum(jnp.einsum("bixy,io->boxy", feat, w1_bf)
                    + b1[None, :, None, None], 0.0)
    bevf_ref = jnp.einsum("bixy,io->boxy", h, w2) + b2[None, :, None, None]
    seg_ref = jnp.einsum("bixy,io->boxy", bevf_ref, ws) + bs[None, :, None, None]

    err = max(float(jnp.max(jnp.abs(bev_f - bevf_ref))),
              float(jnp.max(jnp.abs(seg - seg_ref))))
    assert err < 1e-2, f"BEV head mismatch vs reference: max abs err {err}"

    # Exercise the padded-tail path (N=512 not a multiple of tile=320).
    bev_f2, seg2 = bev_pool_mlp_seg(volume, w1, b1, w2, b2, ws, bs,
                                    split_z=zp, pool_kz=kz, tile=320)
    jax.block_until_ready(bev_f2)
    err2 = max(float(jnp.max(jnp.abs(bev_f2 - bevf_ref))),
               float(jnp.max(jnp.abs(seg2 - seg_ref))))
    assert err2 < 1e-2, f"padded-tile BEV head mismatch: max abs err {err2}"

    print("KERNEL_OK")
</pallas_src>

<mosaic_0001>
module attributes {stable_mosaic.version = 11 : i64} {
  func.func @_bev_head_kernel(%arg0: i32, %arg1: memref<256x256xbf16, #tpu.memory_space<vmem>>, %arg2: memref<256x32xbf16, #tpu.memory_space<vmem>>, %arg3: memref<1x32xf32, #tpu.memory_space<vmem>>, %arg4: memref<32x40xbf16, #tpu.memory_space<vmem>>, %arg5: memref<1x40xf32, #tpu.memory_space<vmem>>, %arg6: memref<256x40xbf16, #tpu.memory_space<vmem>>) attributes {dimension_semantics = [#tpu.dimension_semantics<parallel>], iteration_bounds = array<i64: 2>, scalar_prefetch = 0 : i64, scratch_operands = 0 : i64, tpu.core_type = #tpu.core_type<tc>, window_params = [{transform_indices = @transform_0, window_bounds = array<i64: 256, 256>}, {pipeline_mode = #tpu.pipeline_mode<synchronous>, transform_indices = @transform_1, window_bounds = array<i64: 256, 32>}, {pipeline_mode = #tpu.pipeline_mode<synchronous>, transform_indices = @transform_2, window_bounds = array<i64: 1, 32>}, {pipeline_mode = #tpu.pipeline_mode<synchronous>, transform_indices = @transform_3, window_bounds = array<i64: 32, 40>}, {pipeline_mode = #tpu.pipeline_mode<synchronous>, transform_indices = @transform_4, window_bounds = array<i64: 1, 40>}, {transform_indices = @transform_5, window_bounds = array<i64: 256, 40>}]} {
    %c0 = arith.constant 0 : index
    %c0_0 = arith.constant 0 : index
    %0 = vector.load %arg1[%c0, %c0_0] : memref<256x256xbf16, #tpu.memory_space<vmem>>, vector<256x256xbf16>
    %c0_1 = arith.constant 0 : index
    %c0_2 = arith.constant 0 : index
    %1 = vector.load %arg2[%c0_1, %c0_2] : memref<256x32xbf16, #tpu.memory_space<vmem>>, vector<256x32xbf16>
    %cst = arith.constant dense<0.000000e+00> : vector<256x32xf32>
    %2 = tpu.matmul %0, %1, %cst {dimension_numbers = #tpu.dot_dimension_numbers<[1], [0], [0], [1], [0, 0, 1, 1], [], []>} : vector<256x256xbf16>, vector<256x32xbf16>, vector<256x32xf32> -> vector<256x32xf32>
    %c0_3 = arith.constant 0 : index
    %c0_4 = arith.constant 0 : index
    %3 = vector.load %arg3[%c0_3, %c0_4] : memref<1x32xf32, #tpu.memory_space<vmem>>, vector<1x32xf32>
    %4 = vector.broadcast %3 : vector<1x32xf32> to vector<256x32xf32>
    %5 = arith.addf %2, %4 : vector<256x32xf32>
    %cst_5 = arith.constant 0.000000e+00 : f32
    %6 = vector.broadcast %cst_5 : f32 to vector<256x32xf32>
    %7 = arith.maximumf %5, %6 : vector<256x32xf32>
    %8 = arith.truncf %7 : vector<256x32xf32> to vector<256x32xbf16>
    %c0_6 = arith.constant 0 : index
    %c0_7 = arith.constant 0 : index
    %9 = vector.load %arg4[%c0_6, %c0_7] : memref<32x40xbf16, #tpu.memory_space<vmem>>, vector<32x40xbf16>
    %cst_8 = arith.constant dense<0.000000e+00> : vector<256x40xf32>
    %10 = tpu.matmul %8, %9, %cst_8 {dimension_numbers = #tpu.dot_dimension_numbers<[1], [0], [0], [1], [0, 0, 1, 1], [], []>} : vector<256x32xbf16>, vector<32x40xbf16>, vector<256x40xf32> -> vector<256x40xf32>
    %c0_9 = arith.constant 0 : index
    %c0_10 = arith.constant 0 : index
    %11 = vector.load %arg5[%c0_9, %c0_10] : memref<1x40xf32, #tpu.memory_space<vmem>>, vector<1x40xf32>
    %12 = vector.broadcast %11 : vector<1x40xf32> to vector<256x40xf32>
    %13 = arith.addf %10, %12 : vector<256x40xf32>
    %14 = arith.truncf %13 : vector<256x40xf32> to vector<256x40xbf16>
    %c0_11 = arith.constant 0 : index
    %c0_12 = arith.constant 0 : index
    %15 = vector.load %arg6[%c0_11, %c0_12] : memref<256x40xbf16, #tpu.memory_space<vmem>>, vector<256x40xbf16>
    tpu.vector_store %arg6[%c0_11, %c0_12], %14 {strides = array<i32>} : memref<256x40xbf16, #tpu.memory_space<vmem>>, vector<256x40xbf16>,
    return
  }
  func.func @transform_0(%arg0: i32) -> (i32, i32) {
    %c0_i32 = arith.constant 0 : i32
    %c0_i32_0 = arith.constant 0 : i32
    return %arg0, %c0_i32 : i32, i32
  }
  func.func @transform_1(%arg0: i32) -> (i32, i32) {
    %c0_i32 = arith.constant 0 : i32
    %c0_i32_0 = arith.constant 0 : i32
    %c0_i32_1 = arith.constant 0 : i32
    return %c0_i32, %c0_i32_0 : i32, i32
  }
  func.func @transform_2(%arg0: i32) -> (i32, i32) {
    %c0_i32 = arith.constant 0 : i32
    %c0_i32_0 = arith.constant 0 : i32
    %c0_i32_1 = arith.constant 0 : i32
    return %c0_i32, %c0_i32_0 : i32, i32
  }
  func.func @transform_3(%arg0: i32) -> (i32, i32) {
    %c0_i32 = arith.constant 0 : i32
    %c0_i32_0 = arith.constant 0 : i32
    %c0_i32_1 = arith.constant 0 : i32
    return %c0_i32, %c0_i32_0 : i32, i32
  }
  func.func @transform_4(%arg0: i32) -> (i32, i32) {
    %c0_i32 = arith.constant 0 : i32
    %c0_i32_0 = arith.constant 0 : i32
    %c0_i32_1 = arith.constant 0 : i32
    return %c0_i32, %c0_i32_0 : i32, i32
  }
  func.func @transform_5(%arg0: i32) -> (i32, i32) {
    %c0_i32 = arith.constant 0 : i32
    %c0_i32_0 = arith.constant 0 : i32
    return %arg0, %c0_i32 : i32, i32
  }
}

</mosaic_0001>

<llo_original>
// kernel: tpu_custom_call.1
$region0: #{tpu_custom_call.1}
  #allocation0 [shape = 'u32[]', space=smem, size = 0x4, offset = 0x4, fixed_abs, tag = 'smem constant byte address 0x4 - core index']
  #allocation1 [shape = 'u32[144,128]{1,0:T(1,128)}', space=vmem, size = 0x12000, scoped, tag = 'internal scratch']
  %s0 = inlined_call_operand.hbm [shape: bf16[512,256], index: 0, kind: input, shape index: {}]
  %s1 = inlined_call_operand.vmem [shape: bf16[256,32], index: 1, kind: input, shape index: {}]
  %s2 = inlined_call_operand.vmem [shape: f32[1,32], index: 2, kind: input, shape index: {}]
  %s3 = inlined_call_operand.vmem [shape: bf16[32,40], index: 3, kind: input, shape index: {}]
  %s4 = inlined_call_operand.vmem [shape: f32[1,40], index: 4, kind: input, shape index: {}]
  %s5 = inlined_call_operand.vmem [shape: bf16[512,40], index: 5, kind: output, shape index: {}]
  %s6 = sld [smem:[#allocation0]]
  $region57: #{tpu_custom_call.1} parent=0
    _
  %s8 = ssub.s32 1, %s6
  %s9 = scalar_select 0, %s8, %s6
  $region1: #{tpu_custom_call.1} parent=0
    #allocation2 [shape = 'u8[262144]{0}', space=vmem, size = 0x40000, scoped, tag = 'input window, operand 0']
    #allocation3 [shape = 's32[2]{0}', space=sflag, size = 0x8, scoped, tag = 'scoped memory for tpu_custom_call.1']
    %10 = vsyncpa [#allocation3], 0
    %s11 = scalar_lea.sflag [#allocation3], 1
    %12 = vsyncpa %s11, 0
    loop: start=0, step=1, limit=4
    $region2: #{tpu_custom_call.1} parent=1 // loop_pre_header
      _
    $region3: #{tpu_custom_call.1} parent=1 // loop_header
      %s14 = sphi 0, %s18
      %p15 = scmp.ge.s32.totalorder %s14, 4
      %s24 = sphi 0, %s26
      %s27 = sphi 0, %s24
      %s28 = sphi 0, %s27
      %s44 = sphi 0, %s28
      %s48 = sphi 0, %s48
      %s50 = sphi 0, %s48
      %s51 = sphi 0, %s50
      %s65 = sphi 0, %s51
      %s69 = sphi 0, %s69
      %s71 = sphi 0, %s69
      %s72 = sphi 0, %s71
      %s86 = sphi 0, %s72
      %s90 = sphi 0, %s90
      %s92 = sphi 0, %s90
      %s93 = sphi 0, %s92
      %s107 = sphi 0, %s93
      %s111 = sphi 0, %s111
      %s113 = sphi 0, %s111
      %s114 = sphi 0, %s113
      %s128 = sphi 0, %s114
      %s134 = sphi 0, %s136
      %s137 = sphi 0, %s134
      %s138 = sphi 0, %s137
      %s154 = sphi 0, %s138
    $region4: #{tpu_custom_call.1} parent=1 // loop_header_branch
      %17 = sbr.rel (%p15) target = $region8
    $region5: #{tpu_custom_call.1} parent=1 // loop_body
      %s19 = ssub.s32 %s14, 1
      %s20 = ssub.s32 %s14, 2
      %s21 = sadd.s32 %s14, 1
      %s22 = ssub.s32 %s14, %s21
      %p23 = scmp.eq.s32.totalorder %s22, 0
      %s25 = sadd.s32 %s24, 1
      %s26 = scalar_select %p23, %s24, %s25
      %p29 = pneg %p23
      %p30 = scmp.eq.s32.totalorder %s14, 1
      %p31 = por %p29, %p30
      %p32 = scmp.ne.s32.totalorder %s24, %s27
      %p33 = scmp.eq.s32.totalorder %s14, 0
      %p34 = por %p32, %p33
      %p35 = scmp.ne.s32.totalorder %s24, %s27
      %p36 = scmp.eq.s32.totalorder %s19, 1
      %p37 = por %p35, %p36
      %p38 = scmp.ne.s32.totalorder %s27, %s28
      %p39 = scmp.eq.s32.totalorder %s19, 0
      %p40 = por %p38, %p39
      %p41 = scmp.ne.s32.totalorder %s27, %s28
      %p42 = scmp.eq.s32.totalorder %s20, 1
      %p43 = por %p41, %p42
      %p45 = scmp.ne.s32.totalorder %s28, %s44
      %p46 = scmp.eq.s32.totalorder %s20, 0
      %p47 = por %p45, %p46
      %s49 = sadd.s32 %s48, 1
      %p52 = scmp.eq.s32.totalorder %s14, 1
      %p53 = scmp.ne.s32.totalorder %s48, %s50
      %p54 = scmp.eq.s32.totalorder %s14, 0
      %p55 = por %p53, %p54
      %p56 = scmp.ne.s32.totalorder %s48, %s50
      %p57 = scmp.eq.s32.totalorder %s19, 1
      %p58 = por %p56, %p57
      %p59 = scmp.ne.s32.totalorder %s50, %s51
      %p60 = scmp.eq.s32.totalorder %s19, 0
      %p61 = por %p59, %p60
      %p62 = scmp.ne.s32.totalorder %s50, %s51
      %p63 = scmp.eq.s32.totalorder %s20, 1
      %p64 = por %p62, %p63
      %p66 = scmp.ne.s32.totalorder %s51, %s65
      %p67 = scmp.eq.s32.totalorder %s20, 0
      %p68 = por %p66, %p67
      %s70 = sadd.s32 %s69, 1
      %p73 = scmp.eq.s32.totalorder %s14, 1
      %p74 = scmp.ne.s32.totalorder %s69, %s71
      %p75 = scmp.eq.s32.totalorder %s14, 0
      %p76 = por %p74, %p75
      %p77 = scmp.ne.s32.totalorder %s69, %s71
      %p78 = scmp.eq.s32.totalorder %s19, 1
      %p79 = por %p77, %p78
      %p80 = scmp.ne.s32.totalorder %s71, %s72
      %p81 = scmp.eq.s32.totalorder %s19, 0
      %p82 = por %p80, %p81
      %p83 = scmp.ne.s32.totalorder %s71, %s72
      %p84 = scmp.eq.s32.totalorder %s20, 1
      %p85 = por %p83, %p84
      %p87 = scmp.ne.s32.totalorder %s72, %s86
      %p88 = scmp.eq.s32.totalorder %s20, 0
      %p89 = por %p87, %p88
      %s91 = sadd.s32 %s90, 1
      %p94 = scmp.eq.s32.totalorder %s14, 1
      %p95 = scmp.ne.s32.totalorder %s90, %s92
      %p96 = scmp.eq.s32.totalorder %s14, 0
      %p97 = por %p95, %p96
      %p98 = scmp.ne.s32.totalorder %s90, %s92
      %p99 = scmp.eq.s32.totalorder %s19, 1
      %p100 = por %p98, %p99
      %p101 = scmp.ne.s32.totalorder %s92, %s93
      %p102 = scmp.eq.s32.totalorder %s19, 0
      %p103 = por %p101, %p102
      %p104 = scmp.ne.s32.totalorder %s92, %s93
      %p105 = scmp.eq.s32.totalorder %s20, 1
      %p106 = por %p104, %p105
      %p108 = scmp.ne.s32.totalorder %s93, %s107
      %p109 = scmp.eq.s32.totalorder %s20, 0
      %p110 = por %p108, %p109
      %s112 = sadd.s32 %s111, 1
      %p115 = scmp.eq.s32.totalorder %s14, 1
      %p116 = scmp.ne.s32.totalorder %s111, %s113
      %p117 = scmp.eq.s32.totalorder %s14, 0
      %p118 = por %p116, %p117
      %p119 = scmp.ne.s32.totalorder %s111, %s113
      %p120 = scmp.eq.s32.totalorder %s19, 1
      %p121 = por %p119, %p120
      %p122 = scmp.ne.s32.totalorder %s113, %s114
      %p123 = scmp.eq.s32.totalorder %s19, 0
      %p124 = por %p122, %p123
      %p125 = scmp.ne.s32.totalorder %s113, %s114
      %p126 = scmp.eq.s32.totalorder %s20, 1
      %p127 = por %p125, %p126
      %p129 = scmp.ne.s32.totalorder %s114, %s128
      %p130 = scmp.eq.s32.totalorder %s20, 0
      %p131 = por %p129, %p130
      %s132 = ssub.s32 %s14, %s21
      %p133 = scmp.eq.s32.totalorder %s132, 0
      %s135 = sadd.s32 %s134, 1
      %s136 = scalar_select %p133, %s134, %s135
      %p139 = pneg %p133
      %p140 = scmp.eq.s32.totalorder %s14, 1
      %p141 = por %p139, %p140
      %p142 = scmp.ne.s32.totalorder %s134, %s137
      %p143 = scmp.eq.s32.totalorder %s14, 0
      %p144 = por %p142, %p143
      %p145 = scmp.ne.s32.totalorder %s134, %s137
      %p146 = scmp.eq.s32.totalorder %s19, 1
      %p147 = por %p145, %p146
      %p148 = scmp.ne.s32.totalorder %s137, %s138
      %p149 = scmp.eq.s32.totalorder %s19, 0
      %p150 = por %p148, %p149
      %p151 = scmp.ne.s32.totalorder %s137, %s138
      %p152 = scmp.eq.s32.totalorder %s20, 1
      %p153 = por %p151, %p152
      %p155 = scmp.ne.s32.totalorder %s138, %s154
      %p156 = scmp.eq.s32.totalorder %s20, 0
      %p157 = por %p155, %p156
      %p158 = scmp.le.s32.totalorder 1, %s14
      %p159 = scmp.lt.s32.totalorder %s14, 3
      %p160 = pnand %p158, %p159
      %p161 = pneg %p160
      // Predicated region
      $region9: #{tpu_custom_call.1} parent=5 // pred_check
        _
      $region10: #{tpu_custom_call.1} parent=5 // pred_check_branch
        %163 = sbr.rel (%p160) target = $region12
      $region11: #{tpu_custom_call.1} parent=5 // pred_region
        %s164 = ssub.s32 %s14, 1
        // Predicated region
        $region13: #{tpu_custom_call.1} parent=11 // pred_check
          %p165 = pneg %p61
        $region14: #{tpu_custom_call.1} parent=11 // pred_check_branch
          %167 = sbr.rel (%p165) target = $region16
        $region15: #{tpu_custom_call.1} parent=11 // pred_region
          _
        $region16: #{tpu_custom_call.1} parent=11 // pred_fallthru
          _
        // Predicated region
        $region17: #{tpu_custom_call.1} parent=11 // pred_check
          %p168 = pneg %p82
        $region18: #{tpu_custom_call.1} parent=11 // pred_check_branch
          %170 = sbr.rel (%p168) target = $region20
        $region19: #{tpu_custom_call.1} parent=11 // pred_region
          _
        $region20: #{tpu_custom_call.1} parent=11 // pred_fallthru
          _
        // Predicated region
        $region21: #{tpu_custom_call.1} parent=11 // pred_check
          %p171 = pneg %p103
        $region22: #{tpu_custom_call.1} parent=11 // pred_check_branch
          %173 = sbr.rel (%p171) target = $region24
        $region23: #{tpu_custom_call.1} parent=11 // pred_region
          _
        $region24: #{tpu_custom_call.1} parent=11 // pred_fallthru
          _
        // Predicated region
        $region25: #{tpu_custom_call.1} parent=11 // pred_check
          %p174 = pneg %p124
        $region26: #{tpu_custom_call.1} parent=11 // pred_check_branch
          %176 = sbr.rel (%p174) target = $region28
        $region27: #{tpu_custom_call.1} parent=11 // pred_region
          _
        $region28: #{tpu_custom_call.1} parent=11 // pred_fallthru
          _
      $region12: #{tpu_custom_call.1} parent=5 // pred_fallthru
        _
      %p177 = scmp.lt.s32.totalorder %s14, 2
      // Predicated region
      $region29: #{tpu_custom_call.1} parent=5 // pred_check
        %p178 = pneg %p177
      $region30: #{tpu_custom_call.1} parent=5 // pred_check_branch
        %180 = sbr.rel (%p178) target = $region32
      $region31: #{tpu_custom_call.1} parent=5 // pred_region
        // Predicated region
        $region33: #{tpu_custom_call.1} parent=31 // pred_check
          %p181 = pneg %p34
        $region34: #{tpu_custom_call.1} parent=31 // pred_check_branch
          %183 = sbr.rel (%p181) target = $region36
        $region35: #{tpu_custom_call.1} parent=31 // pred_region
          %s184 = sand.u32 %s24, 1
          %s185 = scalar_lea.sflag [#allocation3], %s184
          %s186 = sand.u32 %s24, 1
          %s187 = smul.addr %s186, 256
          %s188 = scalar_lea.vmem [#allocation2], %s187
          %s189 = smul.u32 32, %s14
          %s191 = ssub.s32 4096, 4096
          %192 = vsyncadd %s185, %s191
          %s193 = smul.addr %s189, 2
          %s194 = smul.addr %s193, 64
          %s195 = scalar_lea.hbm %s0, %s194
          %s196 = sshll.u32 %s188, 4
          %s197 = int_to_ptr.vmem [resolvable:$true] %s196
          %202 = dma.hbm_to_vmem [thread:$0]  %s195, 4096, %s197, %s185, 128, 128, 8
        $region36: #{tpu_custom_call.1} parent=31 // pred_fallthru
          _
      $region32: #{tpu_custom_call.1} parent=5 // pred_fallthru
        _
      %p203 = scmp.le.s32.totalorder 1, %s14
      %p204 = scmp.lt.s32.totalorder %s14, 3
      %p205 = pnand %p203, %p204
      %p206 = pneg %p205
      // Predicated region
      $region37: #{tpu_custom_call.1} parent=5 // pred_check
        _
      $region38: #{tpu_custom_call.1} parent=5 // pred_check_branch
        %208 = sbr.rel (%p205) target = $region40
      $region39: #{tpu_custom_call.1} parent=5 // pred_region
        %s209 = ssub.s32 %s14, 1
        %s210 = sand.u32 %s27, 1
        %s211 = scalar_lea.sflag [#allocation3], %s210
        %s212 = sand.u32 %s27, 1
        %s213 = smul.addr %s212, 256
        %s214 = scalar_lea.vmem [#allocation2], %s213
        // Predicated region
        $region41: #{tpu_custom_call.1} parent=39 // pred_check
          %p215 = pneg %p40
        $region42: #{tpu_custom_call.1} parent=39 // pred_check_branch
          %217 = sbr.rel (%p215) target = $region44
        $region43: #{tpu_custom_call.1} parent=39 // pred_region
          %218 = dma.done %s211, 4096
        $region44: #{tpu_custom_call.1} parent=39 // pred_fallthru
          _
        %s219 = sand.u32 %s27, 1
        %s220 = scalar_lea.sflag [#allocation3], %s219
        %s221 = sand.u32 %s27, 1
        %s222 = smul.addr %s221, 256
        %s223 = scalar_lea.vmem [#allocation2], %s222
        %p224 = pneg %p40
        %p225 = pneg %p37
        %p226 = pneg %p61
        %p227 = pneg %p58
        %p228 = pneg %p82
        %p229 = pneg %p79
        %p230 = pneg %p103
        %p231 = pneg %p100
        %p232 = pneg %p124
        %p233 = pneg %p121
        %p234 = pneg %p150
        %p235 = pneg %p147
        %s236 = smul.u32 32, %s19
        %p237 = scmp.lt.s32.totalorder %s236, 63
        %s238 = scalar_select %p237, %s236, 63
        %s239 = smul.addr %s238, 4
        %s240 = scalar_lea.vmem %s5, %s239
        %s241 = smul.u32 32, %s19
        %s242 = smul.u32 32, %s19
        %p243 = scmp.lt.s32.totalorder %s242, 63
        %s244 = scalar_select %p243, %s242, 63
        %s245 = smul.addr %s244, 4
        %s246 = scalar_lea.vmem %s5, %s245
        %s247 = smul.u32 32, %s19
        %v249 = vld [vmem:[%s214] sm:$0xff]
        %v250 = vld [vmem:[%s214 + $0x8] sm:$0xff]
        %v251 = vld [vmem:[%s214 + $0x10] sm:$0xff]
        %v252 = vld [vmem:[%s214 + $0x18] sm:$0xff]
        %v253 = vld [vmem:[%s214 + $0x20] sm:$0xff]
        %v254 = vld [vmem:[%s214 + $0x28] sm:$0xff]
        %v255 = vld [vmem:[%s214 + $0x30] sm:$0xff]
        %v256 = vld [vmem:[%s214 + $0x38] sm:$0xff]
        %v257 = vld [vmem:[%s214 + $0x40] sm:$0xff]
        %v258 = vld [vmem:[%s214 + $0x48] sm:$0xff]
        %v259 = vld [vmem:[%s214 + $0x50] sm:$0xff]
        %v260 = vld [vmem:[%s214 + $0x58] sm:$0xff]
        %v261 = vld [vmem:[%s214 + $0x60] sm:$0xff]
        %v262 = vld [vmem:[%s214 + $0x68] sm:$0xff]
        %v263 = vld [vmem:[%s214 + $0x70] sm:$0xff]
        %v264 = vld [vmem:[%s214 + $0x78] sm:$0xff]
        %v265 = vld [vmem:[%s214 + $0x80] sm:$0xff]
        %v266 = vld [vmem:[%s214 + $0x88] sm:$0xff]
        %v267 = vld [vmem:[%s214 + $0x90] sm:$0xff]
        %v268 = vld [vmem:[%s214 + $0x98] sm:$0xff]
        %v269 = vld [vmem:[%s214 + $0xa0] sm:$0xff]
        %v270 = vld [vmem:[%s214 + $0xa8] sm:$0xff]
        %v271 = vld [vmem:[%s214 + $0xb0] sm:$0xff]
        %v272 = vld [vmem:[%s214 + $0xb8] sm:$0xff]
        %v273 = vld [vmem:[%s214 + $0xc0] sm:$0xff]
        %v274 = vld [vmem:[%s214 + $0xc8] sm:$0xff]
        %v275 = vld [vmem:[%s214 + $0xd0] sm:$0xff]
        %v276 = vld [vmem:[%s214 + $0xd8] sm:$0xff]
        %v277 = vld [vmem:[%s214 + $0xe0] sm:$0xff]
        %v278 = vld [vmem:[%s214 + $0xe8] sm:$0xff]
        %v279 = vld [vmem:[%s214 + $0xf0] sm:$0xff]
        %v280 = vld [vmem:[%s214 + $0xf8] sm:$0xff]
        %v281 = vld [vmem:[%s1] sm:$0xf]
        %v282 = vld [vmem:[%s1 + $0x4] sm:$0xf]
        %v283 = vld [vmem:[%s1 + $0x8] sm:$0xf]
        %v284 = vld [vmem:[%s1 + $0xc] sm:$0xf]
        %v285 = vld [vmem:[%s1 + $0x10] sm:$0xf]
        %v286 = vld [vmem:[%s1 + $0x14] sm:$0xf]
        %v287 = vld [vmem:[%s1 + $0x18] sm:$0xf]
        %v288 = vld [vmem:[%s1 + $0x1c] sm:$0xf]
        %v289 = vld [vmem:[%s1 + $0x20] sm:$0xf]
        %v290 = vld [vmem:[%s1 + $0x24] sm:$0xf]
        %v291 = vld [vmem:[%s1 + $0x28] sm:$0xf]
        %v292 = vld [vmem:[%s1 + $0x2c] sm:$0xf]
        %v293 = vld [vmem:[%s1 + $0x30] sm:$0xf]
        %v294 = vld [vmem:[%s1 + $0x34] sm:$0xf]
        %v295 = vld [vmem:[%s1 + $0x38] sm:$0xf]
        %v296 = vld [vmem:[%s1 + $0x3c] sm:$0xf]
        %v297 = vld [vmem:[%s1 + $0x40] sm:$0xf]
        %v298 = vld [vmem:[%s1 + $0x44] sm:$0xf]
        %v299 = vld [vmem:[%s1 + $0x48] sm:$0xf]
        %v300 = vld [vmem:[%s1 + $0x4c] sm:$0xf]
        %v301 = vld [vmem:[%s1 + $0x50] sm:$0xf]
        %v302 = vld [vmem:[%s1 + $0x54] sm:$0xf]
        %v303 = vld [vmem:[%s1 + $0x58] sm:$0xf]
        %v304 = vld [vmem:[%s1 + $0x5c] sm:$0xf]
        %v305 = vld [vmem:[%s1 + $0x60] sm:$0xf]
        %v306 = vld [vmem:[%s1 + $0x64] sm:$0xf]
        %v307 = vld [vmem:[%s1 + $0x68] sm:$0xf]
        %v308 = vld [vmem:[%s1 + $0x6c] sm:$0xf]
        %v309 = vld [vmem:[%s1 + $0x70] sm:$0xf]
        %v310 = vld [vmem:[%s1 + $0x74] sm:$0xf]
        %v311 = vld [vmem:[%s1 + $0x78] sm:$0xf]
        %v312 = vld [vmem:[%s1 + $0x7c] sm:$0xf]
        %v313 = vld [vmem:[%s2] sm:$0x1]
        %v315 = vlaneseq
        %v316 = vshrl.u32 %v315, 7
        %v317 = vsub.s32 0, %v316
        %v318 = vrot.slane %v313, %v317
        %v352 = vunpack.c.l.b16 %v249
        %v353 = vunpack.c.h.b16 %v249
        %v354 = vunpack.c.l.b16 %v250
        %v355 = vunpack.c.h.b16 %v250
        %v356 = vunpack.c.l.b16 %v251
        %v357 = vunpack.c.h.b16 %v251
        %v358 = vunpack.c.l.b16 %v252
        %v359 = vunpack.c.h.b16 %v252
        %v360 = vunpack.c.l.b16 %v253
        %v361 = vunpack.c.h.b16 %v253
        %v362 = vunpack.c.l.b16 %v254
        %v363 = vunpack.c.h.b16 %v254
        %v364 = vunpack.c.l.b16 %v255
        %v365 = vunpack.c.h.b16 %v255
        %v366 = vunpack.c.l.b16 %v256
        %v367 = vunpack.c.h.b16 %v256
        %v368 = vunpack.c.l.b16 %v257
        %v369 = vunpack.c.h.b16 %v257
        %v370 = vunpack.c.l.b16 %v258
        %v371 = vunpack.c.h.b16 %v258
        %v372 = vunpack.c.l.b16 %v259
        %v373 = vunpack.c.h.b16 %v259
        %v374 = vunpack.c.l.b16 %v260
        %v375 = vunpack.c.h.b16 %v260
        %v376 = vunpack.c.l.b16 %v261
        %v377 = vunpack.c.h.b16 %v261
        %v378 = vunpack.c.l.b16 %v262
        %v379 = vunpack.c.h.b16 %v262
        %v380 = vunpack.c.l.b16 %v263
        %v381 = vunpack.c.h.b16 %v263
        %v382 = vunpack.c.l.b16 %v264
        %v383 = vunpack.c.h.b16 %v264
        %v384 = vunpack.c.l.b16 %v265
        %v385 = vunpack.c.h.b16 %v265
        %v386 = vunpack.c.l.b16 %v266
        %v387 = vunpack.c.h.b16 %v266
        %v388 = vunpack.c.l.b16 %v267
        %v389 = vunpack.c.h.b16 %v267
        %v390 = vunpack.c.l.b16 %v268
        %v391 = vunpack.c.h.b16 %v268
        %v392 = vunpack.c.l.b16 %v269
        %v393 = vunpack.c.h.b16 %v269
        %v394 = vunpack.c.l.b16 %v270
        %v395 = vunpack.c.h.b16 %v270
        %v396 = vunpack.c.l.b16 %v271
        %v397 = vunpack.c.h.b16 %v271
        %v398 = vunpack.c.l.b16 %v272
        %v399 = vunpack.c.h.b16 %v272
        %v400 = vunpack.c.l.b16 %v273
        %v401 = vunpack.c.h.b16 %v273
        %v402 = vunpack.c.l.b16 %v274
        %v403 = vunpack.c.h.b16 %v274
        %v404 = vunpack.c.l.b16 %v275
        %v405 = vunpack.c.h.b16 %v275
        %v406 = vunpack.c.l.b16 %v276
        %v407 = vunpack.c.h.b16 %v276
        %v408 = vunpack.c.l.b16 %v277
        %v409 = vunpack.c.h.b16 %v277
        %v410 = vunpack.c.l.b16 %v278
        %v411 = vunpack.c.h.b16 %v278
        %v412 = vunpack.c.l.b16 %v279
        %v413 = vunpack.c.h.b16 %v279
        %v414 = vunpack.c.l.b16 %v280
        %v415 = vunpack.c.h.b16 %v280
        %v416 = vpack.c.b16 %v354, %v352
        %v417 = vpack.c.b16 %v355, %v353
        %v418 = vpack.c.b16 %v358, %v356
        %v419 = vpack.c.b16 %v359, %v357
        %v420 = vpack.c.b16 %v362, %v360
        %v421 = vpack.c.b16 %v363, %v361
        %v422 = vpack.c.b16 %v366, %v364
        %v423 = vpack.c.b16 %v367, %v365
        %v424 = vpack.c.b16 %v370, %v368
        %v425 = vpack.c.b16 %v371, %v369
        %v426 = vpack.c.b16 %v374, %v372
        %v427 = vpack.c.b16 %v375, %v373
        %v428 = vpack.c.b16 %v378, %v376
        %v429 = vpack.c.b16 %v379, %v377
        %v430 = vpack.c.b16 %v382, %v380
        %v431 = vpack.c.b16 %v383, %v381
        %v432 = vpack.c.b16 %v386, %v384
        %v433 = vpack.c.b16 %v387, %v385
        %v434 = vpack.c.b16 %v390, %v388
        %v435 = vpack.c.b16 %v391, %v389
        %v436 = vpack.c.b16 %v394, %v392
        %v437 = vpack.c.b16 %v395, %v393
        %v438 = vpack.c.b16 %v398, %v396
        %v439 = vpack.c.b16 %v399, %v397
        %v440 = vpack.c.b16 %v402, %v400
        %v441 = vpack.c.b16 %v403, %v401
        %v442 = vpack.c.b16 %v406, %v404
        %v443 = vpack.c.b16 %v407, %v405
        %v444 = vpack.c.b16 %v410, %v408
        %v445 = vpack.c.b16 %v411, %v409
        %v446 = vpack.c.b16 %v414, %v412
        %v447 = vpack.c.b16 %v415, %v413
        %v512 = vunpack.c.l.b16 %v281
        %v513 = vunpack.c.l.b16 %v282
        %v514 = vunpack.c.l.b16 %v283
        %v515 = vunpack.c.l.b16 %v284
        %v516 = vunpack.c.l.b16 %v285
        %v517 = vunpack.c.l.b16 %v286
        %v518 = vunpack.c.l.b16 %v287
        %v519 = vunpack.c.l.b16 %v288
        %v520 = vunpack.c.l.b16 %v289
        %v521 = vunpack.c.l.b16 %v290
        %v522 = vunpack.c.l.b16 %v291
        %v523 = vunpack.c.l.b16 %v292
        %v524 = vunpack.c.l.b16 %v293
        %v525 = vunpack.c.l.b16 %v294
        %v526 = vunpack.c.l.b16 %v295
        %v527 = vunpack.c.l.b16 %v296
        %v528 = vunpack.c.l.b16 %v297
        %v529 = vunpack.c.l.b16 %v298
        %v530 = vunpack.c.l.b16 %v299
        %v531 = vunpack.c.l.b16 %v300
        %v532 = vunpack.c.l.b16 %v301
        %v533 = vunpack.c.l.b16 %v302
        %v534 = vunpack.c.l.b16 %v303
        %v535 = vunpack.c.l.b16 %v304
        %v536 = vunpack.c.l.b16 %v305
        %v537 = vunpack.c.l.b16 %v306
        %v538 = vunpack.c.l.b16 %v307
        %v539 = vunpack.c.l.b16 %v308
        %v540 = vunpack.c.l.b16 %v309
        %v541 = vunpack.c.l.b16 %v310
        %v542 = vunpack.c.l.b16 %v311
        %v543 = vunpack.c.l.b16 %v312
        %v544 = vpack.c.b16 %v513, %v512
        %v545 = vpack.c.b16 %v515, %v514
        %v546 = vpack.c.b16 %v517, %v516
        %v547 = vpack.c.b16 %v519, %v518
        %v548 = vpack.c.b16 %v521, %v520
        %v549 = vpack.c.b16 %v523, %v522
        %v550 = vpack.c.b16 %v525, %v524
        %v551 = vpack.c.b16 %v527, %v526
        %v552 = vpack.c.b16 %v529, %v528
        %v553 = vpack.c.b16 %v531, %v530
        %v554 = vpack.c.b16 %v533, %v532
        %v555 = vpack.c.b16 %v535, %v534
        %v556 = vpack.c.b16 %v537, %v536
        %v557 = vpack.c.b16 %v539, %v538
        %v558 = vpack.c.b16 %v541, %v540
        %v559 = vpack.c.b16 %v543, %v542
        %576 = vmatprep.subr.bf16.mxu0 0
        %577 = vmatpush1.bf16.msra.mxu0 %v544
        %578 = vmatprep.subr.bf16.mxu0 0
        %579 = vmatpush1.bf16.msra.mxu0 %v545
        %580 = vmatprep.subr.bf16.mxu0 0
        %581 = vmatpush1.bf16.msra.mxu0 %v546
        %582 = vmatprep.subr.bf16.mxu0 0
        %583 = vmatpush1.bf16.msra.mxu0 %v547
        %584 = vmatprep.subr.bf16.mxu0 0
        %585 = vmatpush1.bf16.msra.mxu0 %v548
        %586 = vmatprep.subr.bf16.mxu0 0
        %587 = vmatpush1.bf16.msra.mxu0 %v549
        %588 = vmatprep.subr.bf16.mxu0 0
        %589 = vmatpush1.bf16.msra.mxu0 %v550
        %590 = vmatprep.subr.bf16.mxu0 0
        %591 = vmatpush1.bf16.msra.mxu0 %v551
        %592 = vmatprep.subr.bf16.mxu0 0
        %593 = vmatpush1.bf16.msra.mxu0 %v552
        %594 = vmatprep.subr.bf16.mxu0 0
        %595 = vmatpush1.bf16.msra.mxu0 %v553
        %596 = vmatprep.subr.bf16.mxu0 0
        %597 = vmatpush1.bf16.msra.mxu0 %v554
        %598 = vmatprep.subr.bf16.mxu0 0
        %599 = vmatpush1.bf16.msra.mxu0 %v555
        %600 = vmatprep.subr.bf16.mxu0 0
        %601 = vmatpush1.bf16.msra.mxu0 %v556
        %602 = vmatprep.subr.bf16.mxu0 0
        %603 = vmatpush1.bf16.msra.mxu0 %v557
        %604 = vmatprep.subr.bf16.mxu0 0
        %605 = vmatpush1.bf16.msra.mxu0 %v558
        %606 = vmatprep.subr.bf16.mxu0 0
        %607 = vmatpush1.bf16.msra.mxu0 %v559
        %608 = vmatprep.mubr.bf16.mxu0 %v417
        %609 = vmatmul.mubr.bf16.gmra.mrb[0].mxu0 %v416
        %v610 = vpop.f32.mrb[0].mxu0
        %v611 = vadd.f32 %v318, %v610
        %v612 = vpop.f32.mrb[0].mxu0
        %v613 = vpop.f32.mrb[0].mxu0
        %v614 = vadd.f32 %v318, %v613
        %v615 = vpop.f32.mrb[0].mxu0
        %616 = vmatprep.mubr.bf16.mxu0 %v419
        %617 = vmatmul.mubr.bf16.gmra.mrb[0].mxu0 %v418
        %v618 = vpop.f32.mrb[0].mxu0
        %v619 = vadd.f32 %v318, %v618
        %v620 = vpop.f32.mrb[0].mxu0
        %v621 = vpop.f32.mrb[0].mxu0
        %v622 = vadd.f32 %v318, %v621
        %v623 = vpop.f32.mrb[0].mxu0
        %624 = vmatprep.mubr.bf16.mxu0 %v421
        %625 = vmatmul.mubr.bf16.gmra.mrb[0].mxu0 %v420
        %v626 = vpop.f32.mrb[0].mxu0
        %v627 = vadd.f32 %v318, %v626
        %v628 = vpop.f32.mrb[0].mxu0
        %v629 = vpop.f32.mrb[0].mxu0
        %v630 = vadd.f32 %v318, %v629
        %v631 = vpop.f32.mrb[0].mxu0
        %632 = vmatprep.mubr.bf16.mxu0 %v423
        %633 = vmatmul.mubr.bf16.gmra.mrb[0].mxu0 %v422
        %v634 = vpop.f32.mrb[0].mxu0
        %v635 = vadd.f32 %v318, %v634
        %v636 = vpop.f32.mrb[0].mxu0
        %v637 = vpop.f32.mrb[0].mxu0
        %v638 = vadd.f32 %v318, %v637
        %v639 = vpop.f32.mrb[0].mxu0
        %640 = vmatprep.mubr.bf16.mxu0 %v425
        %641 = vmatmul.mubr.bf16.gmra.mrb[0].mxu0 %v424
        %v642 = vpop.f32.mrb[0].mxu0
        %v643 = vadd.f32 %v318, %v642
        %v644 = vpop.f32.mrb[0].mxu0
        %v645 = vpop.f32.mrb[0].mxu0
        %v646 = vadd.f32 %v318, %v645
        %v647 = vpop.f32.mrb[0].mxu0
        %648 = vmatprep.mubr.bf16.mxu0 %v427
        %649 = vmatmul.mubr.bf16.gmra.mrb[0].mxu0 %v426
        %v650 = vpop.f32.mrb[0].mxu0
        %v651 = vadd.f32 %v318, %v650
        %v652 = vpop.f32.mrb[0].mxu0
        %v653 = vpop.f32.mrb[0].mxu0
        %v654 = vadd.f32 %v318, %v653
        %v655 = vpop.f32.mrb[0].mxu0
        %656 = vmatprep.mubr.bf16.mxu0 %v429
        %657 = vmatmul.mubr.bf16.gmra.mrb[0].mxu0 %v428
        %v658 = vpop.f32.mrb[0].mxu0
        %v659 = vadd.f32 %v318, %v658
        %v660 = vpop.f32.mrb[0].mxu0
        %v661 = vpop.f32.mrb[0].mxu0
        %v662 = vadd.f32 %v318, %v661
        %v663 = vpop.f32.mrb[0].mxu0
        %664 = vmatprep.mubr.bf16.mxu0 %v431
        %665 = vmatmul.mubr.bf16.gmra.mrb[0].mxu0 %v430
        %v666 = vpop.f32.mrb[0].mxu0
        %v667 = vadd.f32 %v318, %v666
        %v668 = vpop.f32.mrb[0].mxu0
        %v669 = vpop.f32.mrb[0].mxu0
        %v670 = vadd.f32 %v318, %v669
        %v671 = vpop.f32.mrb[0].mxu0
        %672 = vmatprep.mubr.bf16.mxu0 %v433
        %673 = vmatmul.mubr.bf16.gmra.mrb[0].mxu0 %v432
        %v674 = vpop.f32.mrb[0].mxu0
        %v675 = vadd.f32 %v318, %v674
        %v676 = vpop.f32.mrb[0].mxu0
        %v677 = vpop.f32.mrb[0].mxu0
        %v678 = vadd.f32 %v318, %v677
        %v679 = vpop.f32.mrb[0].mxu0
        %680 = vmatprep.mubr.bf16.mxu0 %v435
        %681 = vmatmul.mubr.bf16.gmra.mrb[0].mxu0 %v434
        %v682 = vpop.f32.mrb[0].mxu0
        %v683 = vadd.f32 %v318, %v682
        %v684 = vpop.f32.mrb[0].mxu0
        %v685 = vpop.f32.mrb[0].mxu0
        %v686 = vadd.f32 %v318, %v685
        %v687 = vpop.f32.mrb[0].mxu0
        %688 = vmatprep.mubr.bf16.mxu0 %v437
        %689 = vmatmul.mubr.bf16.gmra.mrb[0].mxu0 %v436
        %v690 = vpop.f32.mrb[0].mxu0
        %v691 = vadd.f32 %v318, %v690
        %v692 = vpop.f32.mrb[0].mxu0
        %v693 = vpop.f32.mrb[0].mxu0
        %v694 = vadd.f32 %v318, %v693
        %v695 = vpop.f32.mrb[0].mxu0
        %696 = vmatprep.mubr.bf16.mxu0 %v439
        %697 = vmatmul.mubr.bf16.gmra.mrb[0].mxu0 %v438
        %v698 = vpop.f32.mrb[0].mxu0
        %v699 = vadd.f32 %v318, %v698
        %v700 = vpop.f32.mrb[0].mxu0
        %v701 = vpop.f32.mrb[0].mxu0
        %v702 = vadd.f32 %v318, %v701
        %v703 = vpop.f32.mrb[0].mxu0
        %704 = vmatprep.mubr.bf16.mxu0 %v441
        %705 = vmatmul.mubr.bf16.gmra.mrb[0].mxu0 %v440
        %v706 = vpop.f32.mrb[0].mxu0
        %v707 = vadd.f32 %v318, %v706
        %v708 = vpop.f32.mrb[0].mxu0
        %v709 = vpop.f32.mrb[0].mxu0
        %v710 = vadd.f32 %v318, %v709
        %v711 = vpop.f32.mrb[0].mxu0
        %712 = vmatprep.mubr.bf16.mxu0 %v443
        %713 = vmatmul.mubr.bf16.gmra.mrb[0].mxu0 %v442
        %v714 = vpop.f32.mrb[0].mxu0
        %v715 = vadd.f32 %v318, %v714
        %v716 = vpop.f32.mrb[0].mxu0
        %v717 = vpop.f32.mrb[0].mxu0
        %v718 = vadd.f32 %v318, %v717
        %v719 = vpop.f32.mrb[0].mxu0
        %720 = vmatprep.mubr.bf16.mxu0 %v445
        %721 = vmatmul.mubr.bf16.gmra.mrb[0].mxu0 %v444
        %v722 = vpop.f32.mrb[0].mxu0
        %v723 = vadd.f32 %v318, %v722
        %v724 = vpop.f32.mrb[0].mxu0
        %v725 = vpop.f32.mrb[0].mxu0
        %v726 = vadd.f32 %v318, %v725
        %v727 = vpop.f32.mrb[0].mxu0
        %728 = vmatprep.mubr.bf16.mxu0 %v447
        %729 = vmatmul.mubr.bf16.gmra.mrb[0].mxu0 %v446
        %v730 = vpop.f32.mrb[0].mxu0
        %v731 = vadd.f32 %v318, %v730
        %v732 = vpop.f32.mrb[0].mxu0
        %v733 = vpop.f32.mrb[0].mxu0
        %v734 = vadd.f32 %v318, %v733
        %v735 = vpop.f32.mrb[0].mxu0
        %736 = vdwg.mxu0
        %v737 = vmax.f32 %v611, 0.0
        %v738 = vmax.f32 %v614, 0.0
        %v739 = vmax.f32 %v619, 0.0
        %v740 = vmax.f32 %v622, 0.0
        %v741 = vmax.f32 %v627, 0.0
        %v742 = vmax.f32 %v630, 0.0
        %v743 = vmax.f32 %v635, 0.0
        %v744 = vmax.f32 %v638, 0.0
        %v745 = vmax.f32 %v643, 0.0
        %v746 = vmax.f32 %v646, 0.0
        %v747 = vmax.f32 %v651, 0.0
        %v748 = vmax.f32 %v654, 0.0
        %v749 = vmax.f32 %v659, 0.0
        %v750 = vmax.f32 %v662, 0.0
        %v751 = vmax.f32 %v667, 0.0
        %v752 = vmax.f32 %v670, 0.0
        %v753 = vmax.f32 %v675, 0.0
        %v754 = vmax.f32 %v678, 0.0
        %v755 = vmax.f32 %v683, 0.0
        %v756 = vmax.f32 %v686, 0.0
        %v757 = vmax.f32 %v691, 0.0
        %v758 = vmax.f32 %v694, 0.0
        %v759 = vmax.f32 %v699, 0.0
        %v760 = vmax.f32 %v702, 0.0
        %v761 = vmax.f32 %v707, 0.0
        %v762 = vmax.f32 %v710, 0.0
        %v763 = vmax.f32 %v715, 0.0
        %v764 = vmax.f32 %v718, 0.0
        %v765 = vmax.f32 %v723, 0.0
        %v766 = vmax.f32 %v726, 0.0
        %v767 = vmax.f32 %v731, 0.0
        %v768 = vmax.f32 %v734, 0.0
        %v769 = vpack.c.bf16 %v738, %v737
        %v770 = vpack.c.bf16 %v740, %v739
        %v771 = vpack.c.bf16 %v742, %v741
        %v772 = vpack.c.bf16 %v744, %v743
        %v773 = vpack.c.bf16 %v746, %v745
        %v774 = vpack.c.bf16 %v748, %v747
        %v775 = vpack.c.bf16 %v750, %v749
        %v776 = vpack.c.bf16 %v752, %v751
        %v777 = vpack.c.bf16 %v754, %v753
        %v778 = vpack.c.bf16 %v756, %v755
        %v779 = vpack.c.bf16 %v758, %v757
        %v780 = vpack.c.bf16 %v760, %v759
        %v781 = vpack.c.bf16 %v762, %v761
        %v782 = vpack.c.bf16 %v764, %v763
        %v783 = vpack.c.bf16 %v766, %v765
        %v784 = vpack.c.bf16 %v768, %v767
        %v785 = vld [vmem:[%s3] sm:$0xf]
        %v786 = vld [vmem:[%s3 + $0x4] sm:$0xf]
        %v787 = vld [vmem:[%s3 + $0x8] sm:$0xf]
        %v788 = vld [vmem:[%s3 + $0xc] sm:$0xf]
        %v789 = vld [vmem:[%s4] sm:$0x1]
        %v791 = vlaneseq
        %v792 = vshrl.u32 %v791, 7
        %v793 = vsub.s32 0, %v792
        %v794 = vrot.slane %v789, %v793
        %v800 = vunpack.c.l.b16 %v785
        %v801 = vunpack.c.l.b16 %v786
        %v802 = vunpack.c.l.b16 %v787
        %v803 = vunpack.c.l.b16 %v788
        %v804 = vpack.c.b16 %v801, %v800
        %v805 = vpack.c.b16 %v803, %v802
        %vm808 = vcmask 261120
        %v810 = vsel %vm808, %v769, 0
        %v813 = vsel %vm808, %v770, 0
        %v816 = vsel %vm808, %v771, 0
        %v819 = vsel %vm808, %v772, 0
        %v822 = vsel %vm808, %v773, 0
        %v825 = vsel %vm808, %v774, 0
        %v828 = vsel %vm808, %v775, 0
        %v831 = vsel %vm808, %v776, 0
        %v834 = vsel %vm808, %v777, 0
        %v837 = vsel %vm808, %v778, 0
        %v840 = vsel %vm808, %v779, 0
        %v843 = vsel %vm808, %v780, 0
        %v846 = vsel %vm808, %v781, 0
        %v849 = vsel %vm808, %v782, 0
        %v852 = vsel %vm808, %v783, 0
        %v855 = vsel %vm808, %v784, 0
        %857 = vmatprep.subr.bf16.mxu0 0
        %858 = vmatpush1.bf16.msra.mxu0 %v804
        %859 = vmatprep.subr.bf16.mxu0 0
        %860 = vmatpush1.bf16.msra.mxu0 %v805
        %861 = vmatprep.subr.bf16.mxu0 0
        %862 = vmatpush1.bf16.msra.mxu0 0
        %863 = vmatprep.subr.bf16.mxu0 0
        %864 = vmatpush1.bf16.msra.mxu0 0
        %865 = vmatprep.subr.bf16.mxu0 0
        %866 = vmatpush1.bf16.msra.mxu0 0
        %867 = vmatprep.subr.bf16.mxu0 0
        %868 = vmatpush1.bf16.msra.mxu0 0
        %869 = vmatprep.subr.bf16.mxu0 0
        %870 = vmatpush1.bf16.msra.mxu0 0
        %871 = vmatprep.subr.bf16.mxu0 0
        %872 = vmatpush1.bf16.msra.mxu0 0
        %873 = vmatprep.subr.bf16.mxu0 0
        %874 = vmatpush1.bf16.msra.mxu0 0
        %875 = vmatprep.subr.bf16.mxu0 0
        %876 = vmatpush1.bf16.msra.mxu0 0
        %877 = vmatprep.subr.bf16.mxu0 0
        %878 = vmatpush1.bf16.msra.mxu0 0
        %879 = vmatprep.subr.bf16.mxu0 0
        %880 = vmatpush1.bf16.msra.mxu0 0
        %881 = vmatprep.subr.bf16.mxu0 0
        %882 = vmatpush1.bf16.msra.mxu0 0
        %883 = vmatprep.subr.bf16.mxu0 0
        %884 = vmatpush1.bf16.msra.mxu0 0
        %885 = vmatprep.subr.bf16.mxu0 0
        %886 = vmatpush1.bf16.msra.mxu0 0
        %887 = vmatprep.subr.bf16.mxu0 0
        %888 = vmatpush1.bf16.msra.mxu0 0
        %889 = vmatprep.mubr.bf16.mxu0 0
        %890 = vmatmul.mubr.bf16.gmra.mrb[0].mxu0 %v810
        %v891 = vpop.f32.mrb[0].mxu0
        %v892 = vadd.f32 %v794, %v891
        %v893 = vpop.f32.mrb[0].mxu0
        %v894 = vpop.f32.mrb[0].mxu0
        %v895 = vadd.f32 %v794, %v894
        %v896 = vpop.f32.mrb[0].mxu0
        %897 = vmatprep.mubr.bf16.mxu0 0
        %898 = vmatmul.mubr.bf16.gmra.mrb[0].mxu0 %v813
        %v899 = vpop.f32.mrb[0].mxu0
        %v900 = vadd.f32 %v794, %v899
        %v901 = vpop.f32.mrb[0].mxu0
        %v902 = vpop.f32.mrb[0].mxu0
        %v903 = vadd.f32 %v794, %v902
        %v904 = vpop.f32.mrb[0].mxu0
        %905 = vmatprep.mubr.bf16.mxu0 0
        %906 = vmatmul.mubr.bf16.gmra.mrb[0].mxu0 %v816
        %v907 = vpop.f32.mrb[0].mxu0
        %v908 = vadd.f32 %v794, %v907
        %v909 = vpop.f32.mrb[0].mxu0
        %v910 = vpop.f32.mrb[0].mxu0
        %v911 = vadd.f32 %v794, %v910
        %v912 = vpop.f32.mrb[0].mxu0
        %913 = vmatprep.mubr.bf16.mxu0 0
        %914 = vmatmul.mubr.bf16.gmra.mrb[0].mxu0 %v819
        %v915 = vpop.f32.mrb[0].mxu0
        %v916 = vadd.f32 %v794, %v915
        %v917 = vpop.f32.mrb[0].mxu0
        %v918 = vpop.f32.mrb[0].mxu0
        %v919 = vadd.f32 %v794, %v918
        %v920 = vpop.f32.mrb[0].mxu0
        %921 = vmatprep.mubr.bf16.mxu0 0
        %922 = vmatmul.mubr.bf16.gmra.mrb[0].mxu0 %v822
        %v923 = vpop.f32.mrb[0].mxu0
        %v924 = vadd.f32 %v794, %v923
        %v925 = vpop.f32.mrb[0].mxu0
        %v926 = vpop.f32.mrb[0].mxu0
        %v927 = vadd.f32 %v794, %v926
        %v928 = vpop.f32.mrb[0].mxu0
        %929 = vmatprep.mubr.bf16.mxu0 0
        %930 = vmatmul.mubr.bf16.gmra.mrb[0].mxu0 %v825
        %v931 = vpop.f32.mrb[0].mxu0
        %v932 = vadd.f32 %v794, %v931
        %v933 = vpop.f32.mrb[0].mxu0
        %v934 = vpop.f32.mrb[0].mxu0
        %v935 = vadd.f32 %v794, %v934
        %v936 = vpop.f32.mrb[0].mxu0
        %937 = vmatprep.mubr.bf16.mxu0 0
        %938 = vmatmul.mubr.bf16.gmra.mrb[0].mxu0 %v828
        %v939 = vpop.f32.mrb[0].mxu0
        %v940 = vadd.f32 %v794, %v939
        %v941 = vpop.f32.mrb[0].mxu0
        %v942 = vpop.f32.mrb[0].mxu0
        %v943 = vadd.f32 %v794, %v942
        %v944 = vpop.f32.mrb[0].mxu0
        %945 = vmatprep.mubr.bf16.mxu0 0
        %946 = vmatmul.mubr.bf16.gmra.mrb[0].mxu0 %v831
        %v947 = vpop.f32.mrb[0].mxu0
        %v948 = vadd.f32 %v794, %v947
        %v949 = vpop.f32.mrb[0].mxu0
        %v950 = vpop.f32.mrb[0].mxu0
        %v951 = vadd.f32 %v794, %v950
        %v952 = vpop.f32.mrb[0].mxu0
        %953 = vmatprep.mubr.bf16.mxu0 0
        %954 = vmatmul.mubr.bf16.gmra.mrb[0].mxu0 %v834
        %v955 = vpop.f32.mrb[0].mxu0
        %v956 = vadd.f32 %v794, %v955
        %v957 = vpop.f32.mrb[0].mxu0
        %v958 = vpop.f32.mrb[0].mxu0
        %v959 = vadd.f32 %v794, %v958
        %v960 = vpop.f32.mrb[0].mxu0
        %961 = vmatprep.mubr.bf16.mxu0 0
        %962 = vmatmul.mubr.bf16.gmra.mrb[0].mxu0 %v837
        %v963 = vpop.f32.mrb[0].mxu0
        %v964 = vadd.f32 %v794, %v963
        %v965 = vpop.f32.mrb[0].mxu0
        %v966 = vpop.f32.mrb[0].mxu0
        %v967 = vadd.f32 %v794, %v966
        %v968 = vpop.f32.mrb[0].mxu0
        %969 = vmatprep.mubr.bf16.mxu0 0
        %970 = vmatmul.mubr.bf16.gmra.mrb[0].mxu0 %v840
        %v971 = vpop.f32.mrb[0].mxu0
        %v972 = vadd.f32 %v794, %v971
        %v973 = vpop.f32.mrb[0].mxu0
        %v974 = vpop.f32.mrb[0].mxu0
        %v975 = vadd.f32 %v794, %v974
        %v976 = vpop.f32.mrb[0].mxu0
        %977 = vmatprep.mubr.bf16.mxu0 0
        %978 = vmatmul.mubr.bf16.gmra.mrb[0].mxu0 %v843
        %v979 = vpop.f32.mrb[0].mxu0
        %v980 = vadd.f32 %v794, %v979
        %v981 = vpop.f32.mrb[0].mxu0
        %v982 = vpop.f32.mrb[0].mxu0
        %v983 = vadd.f32 %v794, %v982
        %v984 = vpop.f32.mrb[0].mxu0
        %985 = vmatprep.mubr.bf16.mxu0 0
        %986 = vmatmul.mubr.bf16.gmra.mrb[0].mxu0 %v846
        %v987 = vpop.f32.mrb[0].mxu0
        %v988 = vadd.f32 %v794, %v987
        %v989 = vpop.f32.mrb[0].mxu0
        %v990 = vpop.f32.mrb[0].mxu0
        %v991 = vadd.f32 %v794, %v990
        %v992 = vpop.f32.mrb[0].mxu0
        %993 = vmatprep.mubr.bf16.mxu0 0
        %994 = vmatmul.mubr.bf16.gmra.mrb[0].mxu0 %v849
        %v995 = vpop.f32.mrb[0].mxu0
        %v996 = vadd.f32 %v794, %v995
        %v997 = vpop.f32.mrb[0].mxu0
        %v998 = vpop.f32.mrb[0].mxu0
        %v999 = vadd.f32 %v794, %v998
        %v1000 = vpop.f32.mrb[0].mxu0
        %1001 = vmatprep.mubr.bf16.mxu0 0
        %1002 = vmatmul.mubr.bf16.gmra.mrb[0].mxu0 %v852
        %v1003 = vpop.f32.mrb[0].mxu0
        %v1004 = vadd.f32 %v794, %v1003
        %v1005 = vpop.f32.mrb[0].mxu0
        %v1006 = vpop.f32.mrb[0].mxu0
        %v1007 = vadd.f32 %v794, %v1006
        %v1008 = vpop.f32.mrb[0].mxu0
        %1009 = vmatprep.mubr.bf16.mxu0 0
        %1010 = vmatmul.mubr.bf16.gmra.mrb[0].mxu0 %v855
        %v1011 = vpop.f32.mrb[0].mxu0
        %v1012 = vadd.f32 %v794, %v1011
        %v1013 = vpop.f32.mrb[0].mxu0
        %v1014 = vpop.f32.mrb[0].mxu0
        %v1015 = vadd.f32 %v794, %v1014
        %v1016 = vpop.f32.mrb[0].mxu0
        %1017 = vdwg.mxu0
        %v1018 = vpack.c.bf16 %v895, %v892
        %v1019 = vpack.c.bf16 %v903, %v900
        %v1020 = vpack.c.bf16 %v911, %v908
        %v1021 = vpack.c.bf16 %v919, %v916
        %v1022 = vpack.c.bf16 %v927, %v924
        %v1023 = vpack.c.bf16 %v935, %v932
        %v1024 = vpack.c.bf16 %v943, %v940
        %v1025 = vpack.c.bf16 %v951, %v948
        %v1026 = vpack.c.bf16 %v959, %v956
        %v1027 = vpack.c.bf16 %v967, %v964
        %v1028 = vpack.c.bf16 %v975, %v972
        %v1029 = vpack.c.bf16 %v983, %v980
        %v1030 = vpack.c.bf16 %v991, %v988
        %v1031 = vpack.c.bf16 %v999, %v996
        %v1032 = vpack.c.bf16 %v1007, %v1004
        %v1033 = vpack.c.bf16 %v1015, %v1012
        %v1050 = vunpack.c.l.b16 %v1018
        %v1051 = vunpack.c.h.b16 %v1018
        %v1052 = vunpack.c.l.b16 %v1019
        %v1053 = vunpack.c.h.b16 %v1019
        %v1054 = vunpack.c.l.b16 %v1020
        %v1055 = vunpack.c.h.b16 %v1020
        %v1056 = vunpack.c.l.b16 %v1021
        %v1057 = vunpack.c.h.b16 %v1021
        %v1058 = vunpack.c.l.b16 %v1022
        %v1059 = vunpack.c.h.b16 %v1022
        %v1060 = vunpack.c.l.b16 %v1023
        %v1061 = vunpack.c.h.b16 %v1023
        %v1062 = vunpack.c.l.b16 %v1024
        %v1063 = vunpack.c.h.b16 %v1024
        %v1064 = vunpack.c.l.b16 %v1025
        %v1065 = vunpack.c.h.b16 %v1025
        %v1066 = vunpack.c.l.b16 %v1026
        %v1067 = vunpack.c.h.b16 %v1026
        %v1068 = vunpack.c.l.b16 %v1027
        %v1069 = vunpack.c.h.b16 %v1027
        %v1070 = vunpack.c.l.b16 %v1028
        %v1071 = vunpack.c.h.b16 %v1028
        %v1072 = vunpack.c.l.b16 %v1029
        %v1073 = vunpack.c.h.b16 %v1029
        %v1074 = vunpack.c.l.b16 %v1030
        %v1075 = vunpack.c.h.b16 %v1030
        %v1076 = vunpack.c.l.b16 %v1031
        %v1077 = vunpack.c.h.b16 %v1031
        %v1078 = vunpack.c.l.b16 %v1032
        %v1079 = vunpack.c.h.b16 %v1032
        %v1080 = vunpack.c.l.b16 %v1033
        %v1081 = vunpack.c.h.b16 %v1033
        %v1082 = vpack.c.b16 %v1050, %v1050
        %v1083 = vpack.c.b16 %v1051, %v1051
        %v1084 = vpack.c.b16 %v1052, %v1052
        %v1085 = vpack.c.b16 %v1053, %v1053
        %v1086 = vpack.c.b16 %v1054, %v1054
        %v1087 = vpack.c.b16 %v1055, %v1055
        %v1088 = vpack.c.b16 %v1056, %v1056
        %v1089 = vpack.c.b16 %v1057, %v1057
        %v1090 = vpack.c.b16 %v1058, %v1058
        %v1091 = vpack.c.b16 %v1059, %v1059
        %v1092 = vpack.c.b16 %v1060, %v1060
        %v1093 = vpack.c.b16 %v1061, %v1061
        %v1094 = vpack.c.b16 %v1062, %v1062
        %v1095 = vpack.c.b16 %v1063, %v1063
        %v1096 = vpack.c.b16 %v1064, %v1064
        %v1097 = vpack.c.b16 %v1065, %v1065
        %v1098 = vpack.c.b16 %v1066, %v1066
        %v1099 = vpack.c.b16 %v1067, %v1067
        %v1100 = vpack.c.b16 %v1068, %v1068
        %v1101 = vpack.c.b16 %v1069, %v1069
        %v1102 = vpack.c.b16 %v1070, %v1070
        %v1103 = vpack.c.b16 %v1071, %v1071
        %v1104 = vpack.c.b16 %v1072, %v1072
        %v1105 = vpack.c.b16 %v1073, %v1073
        %v1106 = vpack.c.b16 %v1074, %v1074
        %v1107 = vpack.c.b16 %v1075, %v1075
        %v1108 = vpack.c.b16 %v1076, %v1076
        %v1109 = vpack.c.b16 %v1077, %v1077
        %v1110 = vpack.c.b16 %v1078, %v1078
        %v1111 = vpack.c.b16 %v1079, %v1079
        %v1112 = vpack.c.b16 %v1080, %v1080
        %v1113 = vpack.c.b16 %v1081, %v1081
        %vm1146 = vcmask 322560
        %1147 = vst.msk [vmem:[%s246] sm:$0xf] %vm1146, %v1082
        %1148 = vst.msk [vmem:[%s246 + $0x4] sm:$0xf] %vm1146, %v1083
        %1149 = vst.msk [vmem:[%s246 + $0x8] sm:$0xf] %vm1146, %v1084
        %1150 = vst.msk [vmem:[%s246 + $0xc] sm:$0xf] %vm1146, %v1085
        %1151 = vst.msk [vmem:[%s246 + $0x10] sm:$0xf] %vm1146, %v1086
        %1152 = vst.msk [vmem:[%s246 + $0x14] sm:$0xf] %vm1146, %v1087
        %1153 = vst.msk [vmem:[%s246 + $0x18] sm:$0xf] %vm1146, %v1088
        %1154 = vst.msk [vmem:[%s246 + $0x1c] sm:$0xf] %vm1146, %v1089
        %1155 = vst.msk [vmem:[%s246 + $0x20] sm:$0xf] %vm1146, %v1090
        %1156 = vst.msk [vmem:[%s246 + $0x24] sm:$0xf] %vm1146, %v1091
        %1157 = vst.msk [vmem:[%s246 + $0x28] sm:$0xf] %vm1146, %v1092
        %1158 = vst.msk [vmem:[%s246 + $0x2c] sm:$0xf] %vm1146, %v1093
        %1159 = vst.msk [vmem:[%s246 + $0x30] sm:$0xf] %vm1146, %v1094
        %1160 = vst.msk [vmem:[%s246 + $0x34] sm:$0xf] %vm1146, %v1095
        %1161 = vst.msk [vmem:[%s246 + $0x38] sm:$0xf] %vm1146, %v1096
        %1162 = vst.msk [vmem:[%s246 + $0x3c] sm:$0xf] %vm1146, %v1097
        %1163 = vst.msk [vmem:[%s246 + $0x40] sm:$0xf] %vm1146, %v1098
        %1164 = vst.msk [vmem:[%s246 + $0x44] sm:$0xf] %vm1146, %v1099
        %1165 = vst.msk [vmem:[%s246 + $0x48] sm:$0xf] %vm1146, %v1100
        %1166 = vst.msk [vmem:[%s246 + $0x4c] sm:$0xf] %vm1146, %v1101
        %1167 = vst.msk [vmem:[%s246 + $0x50] sm:$0xf] %vm1146, %v1102
        %1168 = vst.msk [vmem:[%s246 + $0x54] sm:$0xf] %vm1146, %v1103
        %1169 = vst.msk [vmem:[%s246 + $0x58] sm:$0xf] %vm1146, %v1104
        %1170 = vst.msk [vmem:[%s246 + $0x5c] sm:$0xf] %vm1146, %v1105
        %1171 = vst.msk [vmem:[%s246 + $0x60] sm:$0xf] %vm1146, %v1106
        %1172 = vst.msk [vmem:[%s246 + $0x64] sm:$0xf] %vm1146, %v1107
        %1173 = vst.msk [vmem:[%s246 + $0x68] sm:$0xf] %vm1146, %v1108
        %1174 = vst.msk [vmem:[%s246 + $0x6c] sm:$0xf] %vm1146, %v1109
        %1175 = vst.msk [vmem:[%s246 + $0x70] sm:$0xf] %vm1146, %v1110
        %1176 = vst.msk [vmem:[%s246 + $0x74] sm:$0xf] %vm1146, %v1111
        %1177 = vst.msk [vmem:[%s246 + $0x78] sm:$0xf] %vm1146, %v1112
        %1178 = vst.msk [vmem:[%s246 + $0x7c] sm:$0xf] %vm1146, %v1113
        %s1179 = smul.u32 32, %s19
        %p1180 = scmp.lt.s32.totalorder %s1179, 63
        %s1181 = scalar_select %p1180, %s1179, 63
        %s1182 = smul.addr %s1181, 4
        %s1183 = scalar_lea.vmem %s5, %s1182
        // Predicated region
        $region45: #{tpu_custom_call.1} parent=39 // pred_check
          %p1184 = pneg %p147
        $region46: #{tpu_custom_call.1} parent=39 // pred_check_branch
          %1186 = sbr.rel (%p1184) target = $region48
        $region47: #{tpu_custom_call.1} parent=39 // pred_region
          %s1187 = smul.u32 32, %s19
        $region48: #{tpu_custom_call.1} parent=39 // pred_fallthru
          _
      $region40: #{tpu_custom_call.1} parent=5 // pred_fallthru
        _
      %p1188 = scmp.le.s32.totalorder 2, %s14
      // Predicated region
      $region49: #{tpu_custom_call.1} parent=5 // pred_check
        %p1189 = pneg %p1188
      $region50: #{tpu_custom_call.1} parent=5 // pred_check_branch
        %1191 = sbr.rel (%p1189) target = $region52
      $region51: #{tpu_custom_call.1} parent=5 // pred_region
        %s1192 = ssub.s32 %s14, 2
        // Predicated region
        $region53: #{tpu_custom_call.1} parent=51 // pred_check
          %p1193 = pneg %p153
        $region54: #{tpu_custom_call.1} parent=51 // pred_check_branch
          %1195 = sbr.rel (%p1193) target = $region56
        $region55: #{tpu_custom_call.1} parent=51 // pred_region
          %s1196 = smul.u32 32, %s20
          %p1197 = scmp.lt.s32.totalorder %s1196, 63
          %s1198 = scalar_select %p1197, %s1196, 63
          %s1199 = smul.addr %s1198, 4
          %s1200 = scalar_lea.vmem %s5, %s1199
        $region56: #{tpu_custom_call.1} parent=51 // pred_fallthru
          _
      $region52: #{tpu_custom_call.1} parent=5 // pred_fallthru
        _
    $region6: #{tpu_custom_call.1} parent=1 // loop_footer
      %s18 = sadd.s32 1, %s14
    $region7: #{tpu_custom_call.1} parent=1 // loop_footer_branch
      %13 = sbr.rel target = $region3
    $region8: #{tpu_custom_call.1} parent=1 // loop_exit
      _
    %1201 = vsyncpa [#allocation3], 1
    %s1202 = scalar_lea.sflag [#allocation3], 1
    %1203 = vsyncpa %s1202, 1

</llo_original>
